<compile_context>
chip_gen: v6e
topology: v6e:2x2x1
jax: 0.10.0
libtpu: 0.0.40
codegen_flags: <defaults>
</compile_context>

<pallas_src>
import jax
import jax.numpy as jnp
from jax.experimental import pallas as pl
from jax.experimental.pallas import tpu as pltpu


def _mlp_kernel(x_ref, w1_ref, b1_ref, w2_ref, b2_ref, w3t_ref, b3_ref, o_ref):
    # Layer 1 (K=1): broadcast outer product on the VPU, no MXU pass.
    # (block, 1) * (1, Hp) -> (block, Hp)
    h = jnp.maximum(x_ref[...] * w1_ref[...] + b1_ref[...], 0.0)
    # Layer 2: full 128x128 MXU matmul with f32 accumulation.
    h = jnp.dot(h, w2_ref[...], preferred_element_type=jnp.float32)
    h = jnp.maximum(h + b2_ref[...], 0.0)
    # Output layer (N=1): elementwise multiply + lane reduction (XLU) instead of
    # a 1-wide MXU matmul.
    out = jnp.sum(h * w3t_ref[...], axis=-1, keepdims=True) + b3_ref[...]
    o_ref[...] = out.astype(o_ref.dtype)


def _pick_block_batch(B):
    # Small batches: single grid step (grid bookkeeping would dominate).
    if B <= 2048:
        return B
    # Large batches: big sublane-dense tiles, but keep >=2 blocks so the
    # "parallel" batch axis can be sharded across TensorCores (v7x megacore).
    for cand in (4096, 2048, 1024, 512, 256, 128, 64, 32, 16, 8):
        if B % cand == 0 and B // cand >= 2:
            return cand
    return B


@jax.jit
def mlp_forward(x, w1, b1, w2, b2, w3, b3):
    """Forward pass of Net.  x: (B, 1); weights in (in, out) layout."""
    B, F_in = x.shape
    H = w1.shape[1]
    F_out = w3.shape[1]
    assert F_in == 1 and F_out == 1, "Net spec has 1 input / 1 output feature"

    # Zero-pad hidden dim to a multiple of 128 (lane width).  Numerically exact.
    Hp = ((H + 127) // 128) * 128
    pad = Hp - H
    w1p = jnp.pad(w1, ((0, 0), (0, pad)))        # (1, Hp)
    b1p = jnp.pad(b1, ((0, 0), (0, pad)))        # (1, Hp)
    w2p = jnp.pad(w2, ((0, pad), (0, pad)))      # (Hp, Hp)
    b2p = jnp.pad(b2, ((0, 0), (0, pad)))        # (1, Hp)
    w3t = jnp.pad(w3.T, ((0, 0), (0, pad)))      # (1, Hp)  (transposed out-weight)
    # b3 stays (1, 1)

    block_batch = _pick_block_batch(B)
    assert B % block_batch == 0
    grid = (B // block_batch,)

    full = lambda shape: pl.BlockSpec(shape, lambda i: (0, 0))

    return pl.pallas_call(
        _mlp_kernel,
        out_shape=jax.ShapeDtypeStruct((B, F_out), x.dtype),
        grid=grid,
        in_specs=[
            pl.BlockSpec((block_batch, F_in), lambda i: (i, 0)),  # x: batch-tiled
            full((1, Hp)),    # w1 (row vector, in_features == 1)
            full((1, Hp)),    # b1
            full((Hp, Hp)),   # w2
            full((1, Hp)),    # b2
            full((1, Hp)),    # w3^T
            full((1, 1)),     # b3
        ],
        out_specs=pl.BlockSpec((block_batch, F_out), lambda i: (i, 0)),
        # TODO(synk): for very large B, a lane-dense (1, block_batch) output layout
        # (batch on lanes) would avoid masked 1-of-128 lane stores.
        compiler_params=pltpu.CompilerParams(
            dimension_semantics=("parallel",),
            vmem_limit_bytes=32 << 20,   # safe on v5e/v6e/v7x; usage is << this
        ),
    )(x, w1p, b1p, w2p, b2p, w3t, b3)


def init_params(key, n_intermediate_layers=2, n_neurons=100,
                n_features_in=1, n_outputs=1, dtype=jnp.float32):
    """PyTorch-style uniform(-1/sqrt(fan_in), 1/sqrt(fan_in)) init, (in,out) layout."""
    params = []
    cur = n_features_in
    dims = [n_neurons] * n_intermediate_layers + [n_outputs]
    for d in dims:
        key, kw, kb = jax.random.split(key, 3)
        bound = 1.0 / jnp.sqrt(jnp.array(cur, dtype))
        w = jax.random.uniform(kw, (cur, d), dtype, -bound, bound)
        b = jax.random.uniform(kb, (1, d), dtype, -bound, bound)
        params.append((w, b))
        cur = d
    return params


def reference_forward(x, params):
    h = x
    for (w, b) in params[:-1]:
        h = jnp.maximum(h @ w + b, 0.0)
    w, b = params[-1]
    return h @ w + b


if __name__ == "__main__":
    key = jax.random.PRNGKey(0)
    key, kx = jax.random.split(key)

    B = 128
    x = jax.random.normal(kx, (B, 1), jnp.float32)        # n_features_in = 1

    (w1, b1), (w2, b2), (w3, b3) = init_params(key)       # 1->100, 100->100, 100->1

    out = mlp_forward(x, w1, b1, w2, b2, w3, b3)
    out = jax.block_until_ready(out)

    ref = reference_forward(x, [(w1, b1), (w2, b2), (w3, b3)])
    assert out.shape == (B, 1)
    assert jnp.allclose(out, ref, atol=1e-5, rtol=1e-5), "mismatch vs reference"

    print("KERNEL_OK")
</pallas_src>

<mosaic_0001>
module attributes {stable_mosaic.version = 11 : i64} {
  func.func @_mlp_kernel(%arg0: i32, %arg1: memref<128x1xf32, #tpu.memory_space<vmem>>, %arg2: memref<1x128xf32, #tpu.memory_space<vmem>>, %arg3: memref<1x128xf32, #tpu.memory_space<vmem>>, %arg4: memref<128x128xf32, #tpu.memory_space<vmem>>, %arg5: memref<1x128xf32, #tpu.memory_space<vmem>>, %arg6: memref<1x128xf32, #tpu.memory_space<vmem>>, %arg7: memref<1x1xf32, #tpu.memory_space<vmem>>, %arg8: memref<128x1xf32, #tpu.memory_space<vmem>>) attributes {dimension_semantics = [#tpu.dimension_semantics<parallel>], iteration_bounds = array<i64: 1>, scalar_prefetch = 0 : i64, scratch_operands = 0 : i64, tpu.core_type = #tpu.core_type<tc>, window_params = [{transform_indices = @transform_0, window_bounds = array<i64: 128, 1>}, {pipeline_mode = #tpu.pipeline_mode<synchronous>, transform_indices = @transform_1, window_bounds = array<i64: 1, 128>}, {pipeline_mode = #tpu.pipeline_mode<synchronous>, transform_indices = @transform_2, window_bounds = array<i64: 1, 128>}, {pipeline_mode = #tpu.pipeline_mode<synchronous>, transform_indices = @transform_3, window_bounds = array<i64: 128, 128>}, {pipeline_mode = #tpu.pipeline_mode<synchronous>, transform_indices = @transform_4, window_bounds = array<i64: 1, 128>}, {pipeline_mode = #tpu.pipeline_mode<synchronous>, transform_indices = @transform_5, window_bounds = array<i64: 1, 128>}, {pipeline_mode = #tpu.pipeline_mode<synchronous>, transform_indices = @transform_6, window_bounds = array<i64: 1, 1>}, {transform_indices = @transform_7, window_bounds = array<i64: 128, 1>}]} {
    %c0 = arith.constant 0 : index
    %c0_0 = arith.constant 0 : index
    %0 = vector.load %arg1[%c0, %c0_0] : memref<128x1xf32, #tpu.memory_space<vmem>>, vector<128x1xf32>
    %c0_1 = arith.constant 0 : index
    %c0_2 = arith.constant 0 : index
    %1 = vector.load %arg2[%c0_1, %c0_2] : memref<1x128xf32, #tpu.memory_space<vmem>>, vector<1x128xf32>
    %2 = vector.broadcast %0 : vector<128x1xf32> to vector<128x128xf32>
    %3 = vector.broadcast %1 : vector<1x128xf32> to vector<128x128xf32>
    %4 = arith.mulf %2, %3 : vector<128x128xf32>
    %c0_3 = arith.constant 0 : index
    %c0_4 = arith.constant 0 : index
    %5 = vector.load %arg3[%c0_3, %c0_4] : memref<1x128xf32, #tpu.memory_space<vmem>>, vector<1x128xf32>
    %6 = vector.broadcast %5 : vector<1x128xf32> to vector<128x128xf32>
    %7 = arith.addf %4, %6 : vector<128x128xf32>
    %cst = arith.constant 0.000000e+00 : f32
    %8 = vector.broadcast %cst : f32 to vector<128x128xf32>
    %9 = arith.maximumf %7, %8 : vector<128x128xf32>
    %c0_5 = arith.constant 0 : index
    %c0_6 = arith.constant 0 : index
    %10 = vector.load %arg4[%c0_5, %c0_6] : memref<128x128xf32, #tpu.memory_space<vmem>>, vector<128x128xf32>
    %cst_7 = arith.constant dense<0.000000e+00> : vector<128x128xf32>
    %11 = tpu.matmul %9, %10, %cst_7 {dimension_numbers = #tpu.dot_dimension_numbers<[1], [0], [0], [1], [0, 0, 1, 1], [], []>} : vector<128x128xf32>, vector<128x128xf32>, vector<128x128xf32> -> vector<128x128xf32>
    %c0_8 = arith.constant 0 : index
    %c0_9 = arith.constant 0 : index
    %12 = vector.load %arg5[%c0_8, %c0_9] : memref<1x128xf32, #tpu.memory_space<vmem>>, vector<1x128xf32>
    %13 = vector.broadcast %12 : vector<1x128xf32> to vector<128x128xf32>
    %14 = arith.addf %11, %13 : vector<128x128xf32>
    %cst_10 = arith.constant 0.000000e+00 : f32
    %15 = vector.broadcast %cst_10 : f32 to vector<128x128xf32>
    %16 = arith.maximumf %14, %15 : vector<128x128xf32>
    %c0_11 = arith.constant 0 : index
    %c0_12 = arith.constant 0 : index
    %17 = vector.load %arg6[%c0_11, %c0_12] : memref<1x128xf32, #tpu.memory_space<vmem>>, vector<1x128xf32>
    %18 = vector.broadcast %17 : vector<1x128xf32> to vector<128x128xf32>
    %19 = arith.mulf %16, %18 : vector<128x128xf32>
    %cst_13 = arith.constant dense<0.000000e+00> : vector<128xf32>
    %20 = vector.multi_reduction <add>, %19, %cst_13 [1] : vector<128x128xf32> to vector<128xf32>
    %21 = vector.shape_cast %20 : vector<128xf32> to vector<128x1xf32>
    %c0_14 = arith.constant 0 : index
    %c0_15 = arith.constant 0 : index
    %22 = vector.load %arg7[%c0_14, %c0_15] : memref<1x1xf32, #tpu.memory_space<vmem>>, vector<1x1xf32>
    %23 = vector.broadcast %22 : vector<1x1xf32> to vector<128x1xf32>
    %24 = arith.addf %21, %23 : vector<128x1xf32>
    %c0_16 = arith.constant 0 : index
    %c0_17 = arith.constant 0 : index
    %25 = vector.load %arg8[%c0_16, %c0_17] : memref<128x1xf32, #tpu.memory_space<vmem>>, vector<128x1xf32>
    tpu.vector_store %arg8[%c0_16, %c0_17], %24 {strides = array<i32>} : memref<128x1xf32, #tpu.memory_space<vmem>>, vector<128x1xf32>,
    return
  }
  func.func @transform_0(%arg0: i32) -> (i32, i32) {
    %c0_i32 = arith.constant 0 : i32
    %c0_i32_0 = arith.constant 0 : i32
    return %arg0, %c0_i32 : i32, i32
  }
  func.func @transform_1(%arg0: i32) -> (i32, i32) {
    %c0_i32 = arith.constant 0 : i32
    %c0_i32_0 = arith.constant 0 : i32
    %c0_i32_1 = arith.constant 0 : i32
    return %c0_i32, %c0_i32_0 : i32, i32
  }
  func.func @transform_2(%arg0: i32) -> (i32, i32) {
    %c0_i32 = arith.constant 0 : i32
    %c0_i32_0 = arith.constant 0 : i32
    %c0_i32_1 = arith.constant 0 : i32
    return %c0_i32, %c0_i32_0 : i32, i32
  }
  func.func @transform_3(%arg0: i32) -> (i32, i32) {
    %c0_i32 = arith.constant 0 : i32
    %c0_i32_0 = arith.constant 0 : i32
    %c0_i32_1 = arith.constant 0 : i32
    return %c0_i32, %c0_i32_0 : i32, i32
  }
  func.func @transform_4(%arg0: i32) -> (i32, i32) {
    %c0_i32 = arith.constant 0 : i32
    %c0_i32_0 = arith.constant 0 : i32
    %c0_i32_1 = arith.constant 0 : i32
    return %c0_i32, %c0_i32_0 : i32, i32
  }
  func.func @transform_5(%arg0: i32) -> (i32, i32) {
    %c0_i32 = arith.constant 0 : i32
    %c0_i32_0 = arith.constant 0 : i32
    %c0_i32_1 = arith.constant 0 : i32
    return %c0_i32, %c0_i32_0 : i32, i32
  }
  func.func @transform_6(%arg0: i32) -> (i32, i32) {
    %c0_i32 = arith.constant 0 : i32
    %c0_i32_0 = arith.constant 0 : i32
    %c0_i32_1 = arith.constant 0 : i32
    return %c0_i32, %c0_i32_0 : i32, i32
  }
  func.func @transform_7(%arg0: i32) -> (i32, i32) {
    %c0_i32 = arith.constant 0 : i32
    %c0_i32_0 = arith.constant 0 : i32
    return %arg0, %c0_i32 : i32, i32
  }
}

</mosaic_0001>

<llo_original>
// kernel: mlp_forward.1
$region0: #{mlp_forward.1}
  #allocation0 [shape = 'u32[]', space=smem, size = 0x4, offset = 0x4, fixed_abs, tag = 'smem constant byte address 0x4 - core index']
  #allocation1 [shape = 'u32[144,128]{1,0:T(1,128)}', space=vmem, size = 0x12000, scoped, tag = 'internal scratch']
  #allocation2 [shape = 'f32[1,1]{1,0:T(1,128)S(1)}', space=vmem, size = 0x200, scoped, tag = 'scoped memory for mlp_forward.1']
  %s0 = inlined_call_operand.vmem [shape: f32[128,1], index: 0, kind: input, shape index: {}]
  %s1 = inlined_call_operand.vmem [shape: f32[1,128], index: 1, kind: input, shape index: {}]
  %s2 = inlined_call_operand.vmem [shape: f32[1,128], index: 2, kind: input, shape index: {}]
  %s3 = inlined_call_operand.vmem [shape: f32[128,128], index: 3, kind: input, shape index: {}]
  %s4 = inlined_call_operand.vmem [shape: f32[1,128], index: 4, kind: input, shape index: {}]
  %s5 = inlined_call_operand.vmem [shape: f32[1,128], index: 5, kind: input, shape index: {}]
  %s6 = inlined_call_operand.<no memory space> [shape: f32[1,1], index: 6, kind: input, shape index: {}]
  %s7 = inlined_call_operand.vmem [shape: f32[128,1], index: 7, kind: output, shape index: {}]
  %s8 = sld [smem:[#allocation0]]
  $region38: #{mlp_forward.1} parent=0
    _
  %s10 = ssub.s32 1, %s8
  %s11 = scalar_select 0, %s10, %s8
  %v12 = vstv %s6
  %13 = vst [vmem:[#allocation2] sm:$0x1] %v12
  // Predicated region
  $region2: #{mlp_forward.1} parent=0 // pred_check
    _
  $region3: #{mlp_forward.1} parent=0 // pred_check_branch
    %15 = sbr.rel (0) target = $region5
  $region4: #{mlp_forward.1} parent=0 // pred_region
    _
  $region5: #{mlp_forward.1} parent=0 // pred_fallthru
    _
  // Predicated region
  $region6: #{mlp_forward.1} parent=0 // pred_check
    _
  $region7: #{mlp_forward.1} parent=0 // pred_check_branch
    %17 = sbr.rel (0) target = $region9
  $region8: #{mlp_forward.1} parent=0 // pred_region
    _
  $region9: #{mlp_forward.1} parent=0 // pred_fallthru
    _
  // Predicated region
  $region10: #{mlp_forward.1} parent=0 // pred_check
    _
  $region11: #{mlp_forward.1} parent=0 // pred_check_branch
    %19 = sbr.rel (0) target = $region13
  $region12: #{mlp_forward.1} parent=0 // pred_region
    _
  $region13: #{mlp_forward.1} parent=0 // pred_fallthru
    _
  // Predicated region
  $region14: #{mlp_forward.1} parent=0 // pred_check
    _
  $region15: #{mlp_forward.1} parent=0 // pred_check_branch
    %21 = sbr.rel (0) target = $region17
  $region16: #{mlp_forward.1} parent=0 // pred_region
    _
  $region17: #{mlp_forward.1} parent=0 // pred_fallthru
    _
  // Predicated region
  $region18: #{mlp_forward.1} parent=0 // pred_check
    _
  $region19: #{mlp_forward.1} parent=0 // pred_check_branch
    %23 = sbr.rel (0) target = $region21
  $region20: #{mlp_forward.1} parent=0 // pred_region
    _
  $region21: #{mlp_forward.1} parent=0 // pred_fallthru
    _
  // Predicated region
  $region22: #{mlp_forward.1} parent=0 // pred_check
    _
  $region23: #{mlp_forward.1} parent=0 // pred_check_branch
    %25 = sbr.rel (0) target = $region25
  $region24: #{mlp_forward.1} parent=0 // pred_region
    _
  $region25: #{mlp_forward.1} parent=0 // pred_fallthru
    _
  // Predicated region
  $region26: #{mlp_forward.1} parent=0 // pred_check
    _
  $region27: #{mlp_forward.1} parent=0 // pred_check_branch
    %27 = sbr.rel (0) target = $region29
  $region28: #{mlp_forward.1} parent=0 // pred_region
    _
  $region29: #{mlp_forward.1} parent=0 // pred_fallthru
    _
  %v28 = vld [vmem:[%s0] sm:$0xff]
  %v29 = vld [vmem:[%s0 + $0x8] sm:$0xff]
  %v30 = vld [vmem:[%s0 + $0x10] sm:$0xff]
  %v31 = vld [vmem:[%s0 + $0x18] sm:$0xff]
  %v32 = vld [vmem:[%s0 + $0x20] sm:$0xff]
  %v33 = vld [vmem:[%s0 + $0x28] sm:$0xff]
  %v34 = vld [vmem:[%s0 + $0x30] sm:$0xff]
  %v35 = vld [vmem:[%s0 + $0x38] sm:$0xff]
  %v36 = vld [vmem:[%s0 + $0x40] sm:$0xff]
  %v37 = vld [vmem:[%s0 + $0x48] sm:$0xff]
  %v38 = vld [vmem:[%s0 + $0x50] sm:$0xff]
  %v39 = vld [vmem:[%s0 + $0x58] sm:$0xff]
  %v40 = vld [vmem:[%s0 + $0x60] sm:$0xff]
  %v41 = vld [vmem:[%s0 + $0x68] sm:$0xff]
  %v42 = vld [vmem:[%s0 + $0x70] sm:$0xff]
  %v43 = vld [vmem:[%s0 + $0x78] sm:$0xff]
  %v44 = vld [vmem:[%s1] sm:$0x1]
  %46 = vset.pattern.permute.xlu0 0
  %47 = vperm.xlu0 %46, %v28
  %v48 = vpop.permute.xlu0 %47
  %51 = vset.pattern.permute.xlu0 0
  %52 = vperm.xlu0 %51, %v29
  %v53 = vpop.permute.xlu0 %52
  %56 = vset.pattern.permute.xlu0 0
  %57 = vperm.xlu0 %56, %v30
  %v58 = vpop.permute.xlu0 %57
  %61 = vset.pattern.permute.xlu0 0
  %62 = vperm.xlu0 %61, %v31
  %v63 = vpop.permute.xlu0 %62
  %66 = vset.pattern.permute.xlu0 0
  %67 = vperm.xlu0 %66, %v32
  %v68 = vpop.permute.xlu0 %67
  %71 = vset.pattern.permute.xlu0 0
  %72 = vperm.xlu0 %71, %v33
  %v73 = vpop.permute.xlu0 %72
  %76 = vset.pattern.permute.xlu0 0
  %77 = vperm.xlu0 %76, %v34
  %v78 = vpop.permute.xlu0 %77
  %81 = vset.pattern.permute.xlu0 0
  %82 = vperm.xlu0 %81, %v35
  %v83 = vpop.permute.xlu0 %82
  %86 = vset.pattern.permute.xlu0 0
  %87 = vperm.xlu0 %86, %v36
  %v88 = vpop.permute.xlu0 %87
  %91 = vset.pattern.permute.xlu0 0
  %92 = vperm.xlu0 %91, %v37
  %v93 = vpop.permute.xlu0 %92
  %96 = vset.pattern.permute.xlu0 0
  %97 = vperm.xlu0 %96, %v38
  %v98 = vpop.permute.xlu0 %97
  %101 = vset.pattern.permute.xlu0 0
  %102 = vperm.xlu0 %101, %v39
  %v103 = vpop.permute.xlu0 %102
  %106 = vset.pattern.permute.xlu0 0
  %107 = vperm.xlu0 %106, %v40
  %v108 = vpop.permute.xlu0 %107
  %111 = vset.pattern.permute.xlu0 0
  %112 = vperm.xlu0 %111, %v41
  %v113 = vpop.permute.xlu0 %112
  %116 = vset.pattern.permute.xlu0 0
  %117 = vperm.xlu0 %116, %v42
  %v118 = vpop.permute.xlu0 %117
  %121 = vset.pattern.permute.xlu0 0
  %122 = vperm.xlu0 %121, %v43
  %v123 = vpop.permute.xlu0 %122
  %v126 = vlaneseq
  %v127 = vshrl.u32 %v126, 7
  %v128 = vsub.s32 0, %v127
  %v129 = vrot.slane %v44, %v128
  %v131 = vmul.f32 %v48, %v129
  %v132 = vmul.f32 %v53, %v129
  %v133 = vmul.f32 %v58, %v129
  %v134 = vmul.f32 %v63, %v129
  %v135 = vmul.f32 %v68, %v129
  %v136 = vmul.f32 %v73, %v129
  %v137 = vmul.f32 %v78, %v129
  %v138 = vmul.f32 %v83, %v129
  %v139 = vmul.f32 %v88, %v129
  %v140 = vmul.f32 %v93, %v129
  %v141 = vmul.f32 %v98, %v129
  %v142 = vmul.f32 %v103, %v129
  %v143 = vmul.f32 %v108, %v129
  %v144 = vmul.f32 %v113, %v129
  %v145 = vmul.f32 %v118, %v129
  %v146 = vmul.f32 %v123, %v129
  %v147 = vld [vmem:[%s2] sm:$0x1]
  %v149 = vlaneseq
  %v150 = vshrl.u32 %v149, 7
  %v151 = vsub.s32 0, %v150
  %v152 = vrot.slane %v147, %v151
  %v154 = vadd.f32 %v131, %v152
  %v155 = vadd.f32 %v132, %v152
  %v156 = vadd.f32 %v133, %v152
  %v157 = vadd.f32 %v134, %v152
  %v158 = vadd.f32 %v135, %v152
  %v159 = vadd.f32 %v136, %v152
  %v160 = vadd.f32 %v137, %v152
  %v161 = vadd.f32 %v138, %v152
  %v162 = vadd.f32 %v139, %v152
  %v163 = vadd.f32 %v140, %v152
  %v164 = vadd.f32 %v141, %v152
  %v165 = vadd.f32 %v142, %v152
  %v166 = vadd.f32 %v143, %v152
  %v167 = vadd.f32 %v144, %v152
  %v168 = vadd.f32 %v145, %v152
  %v169 = vadd.f32 %v146, %v152
  %v170 = vmax.f32 %v154, 0.0
  %v171 = vmax.f32 %v155, 0.0
  %v172 = vmax.f32 %v156, 0.0
  %v173 = vmax.f32 %v157, 0.0
  %v174 = vmax.f32 %v158, 0.0
  %v175 = vmax.f32 %v159, 0.0
  %v176 = vmax.f32 %v160, 0.0
  %v177 = vmax.f32 %v161, 0.0
  %v178 = vmax.f32 %v162, 0.0
  %v179 = vmax.f32 %v163, 0.0
  %v180 = vmax.f32 %v164, 0.0
  %v181 = vmax.f32 %v165, 0.0
  %v182 = vmax.f32 %v166, 0.0
  %v183 = vmax.f32 %v167, 0.0
  %v184 = vmax.f32 %v168, 0.0
  %v185 = vmax.f32 %v169, 0.0
  %v186 = vld [vmem:[%s3] sm:$0xff]
  %v187 = vld [vmem:[%s3 + $0x8] sm:$0xff]
  %v188 = vld [vmem:[%s3 + $0x10] sm:$0xff]
  %v189 = vld [vmem:[%s3 + $0x18] sm:$0xff]
  %v190 = vld [vmem:[%s3 + $0x20] sm:$0xff]
  %v191 = vld [vmem:[%s3 + $0x28] sm:$0xff]
  %v192 = vld [vmem:[%s3 + $0x30] sm:$0xff]
  %v193 = vld [vmem:[%s3 + $0x38] sm:$0xff]
  %v194 = vld [vmem:[%s3 + $0x40] sm:$0xff]
  %v195 = vld [vmem:[%s3 + $0x48] sm:$0xff]
  %v196 = vld [vmem:[%s3 + $0x50] sm:$0xff]
  %v197 = vld [vmem:[%s3 + $0x58] sm:$0xff]
  %v198 = vld [vmem:[%s3 + $0x60] sm:$0xff]
  %v199 = vld [vmem:[%s3 + $0x68] sm:$0xff]
  %v200 = vld [vmem:[%s3 + $0x70] sm:$0xff]
  %v201 = vld [vmem:[%s3 + $0x78] sm:$0xff]
  %v202 = vld [vmem:[%s4] sm:$0x1]
  %v204 = vlaneseq
  %v205 = vshrl.u32 %v204, 7
  %v206 = vsub.s32 0, %v205
  %v207 = vrot.slane %v202, %v206
  %209 = vmatprep.subr.mxu0 0.0
  %210 = vmatpush1.msra.mxu0 %v201
  %211 = vmatprep.subr.mxu0 0.0
  %212 = vmatpush1.msra.mxu0 %v200
  %213 = vmatprep.subr.mxu0 0.0
  %214 = vmatpush1.msra.mxu0 %v199
  %215 = vmatprep.subr.mxu0 0.0
  %216 = vmatpush1.msra.mxu0 %v198
  %217 = vmatprep.subr.mxu0 0.0
  %218 = vmatpush1.msra.mxu0 %v197
  %219 = vmatprep.subr.mxu0 0.0
  %220 = vmatpush1.msra.mxu0 %v196
  %221 = vmatprep.subr.mxu0 0.0
  %222 = vmatpush1.msra.mxu0 %v195
  %223 = vmatprep.subr.mxu0 0.0
  %224 = vmatpush1.msra.mxu0 %v194
  %225 = vmatprep.subr.mxu0 0.0
  %226 = vmatpush1.msra.mxu0 %v193
  %227 = vmatprep.subr.mxu0 0.0
  %228 = vmatpush1.msra.mxu0 %v192
  %229 = vmatprep.subr.mxu0 0.0
  %230 = vmatpush1.msra.mxu0 %v191
  %231 = vmatprep.subr.mxu0 0.0
  %232 = vmatpush1.msra.mxu0 %v190
  %233 = vmatprep.subr.mxu0 0.0
  %234 = vmatpush1.msra.mxu0 %v189
  %235 = vmatprep.subr.mxu0 0.0
  %236 = vmatpush1.msra.mxu0 %v188
  %237 = vmatprep.subr.mxu0 0.0
  %238 = vmatpush1.msra.mxu0 %v187
  %239 = vmatprep.subr.mxu0 0.0
  %240 = vmatpush1.msra.mxu0 %v186
  %241 = vmatprep.subr.mxu0 0.0
  %242 = vmatpush2.msra.mxu0 0.0
  %243 = vmatprep.subr.mxu0 0.0
  %244 = vmatpush2.msra.mxu0 0.0
  %245 = vmatprep.subr.mxu0 0.0
  %246 = vmatpush2.msra.mxu0 0.0
  %247 = vmatprep.subr.mxu0 0.0
  %248 = vmatpush2.msra.mxu0 0.0
  %249 = vmatprep.subr.mxu0 0.0
  %250 = vmatpush2.msra.mxu0 0.0
  %251 = vmatprep.subr.mxu0 0.0
  %252 = vmatpush2.msra.mxu0 0.0
  %253 = vmatprep.subr.mxu0 0.0
  %254 = vmatpush2.msra.mxu0 0.0
  %255 = vmatprep.subr.mxu0 0.0
  %256 = vmatpush2.msra.mxu0 0.0
  %257 = vmatprep.subr.mxu0 0.0
  %258 = vmatpush2.msra.mxu0 0.0
  %259 = vmatprep.subr.mxu0 0.0
  %260 = vmatpush2.msra.mxu0 0.0
  %261 = vmatprep.subr.mxu0 0.0
  %262 = vmatpush2.msra.mxu0 0.0
  %263 = vmatprep.subr.mxu0 0.0
  %264 = vmatpush2.msra.mxu0 0.0
  %265 = vmatprep.subr.mxu0 0.0
  %266 = vmatpush2.msra.mxu0 0.0
  %267 = vmatprep.subr.mxu0 0.0
  %268 = vmatpush2.msra.mxu0 0.0
  %269 = vmatprep.subr.mxu0 0.0
  %270 = vmatpush2.msra.mxu0 0.0
  %271 = vmatprep.subr.mxu0 0.0
  %272 = vmatpush2.msra.mxu0 0.0
  %273 = vmatprep.mubr.f32.mxu0 0.0
  %274 = vmatmul.mubr.f32.gmra.mxu0 %v170
  %v275 = vpop.f32.mrf.mxu0
  %v276 = vadd.f32 %v207, %v275
  %v277 = vpop.f32.mrf.mxu0
  %278 = vmatprep.mubr.f32.mxu0 0.0
  %279 = vmatmul.mubr.f32.gmra.mxu0 %v171
  %v280 = vpop.f32.mrf.mxu0
  %v281 = vadd.f32 %v207, %v280
  %v282 = vpop.f32.mrf.mxu0
  %283 = vmatprep.mubr.f32.mxu0 0.0
  %284 = vmatmul.mubr.f32.gmra.mxu0 %v172
  %v285 = vpop.f32.mrf.mxu0
  %v286 = vadd.f32 %v207, %v285
  %v287 = vpop.f32.mrf.mxu0
  %288 = vmatprep.mubr.f32.mxu0 0.0
  %289 = vmatmul.mubr.f32.gmra.mxu0 %v173
  %v290 = vpop.f32.mrf.mxu0
  %v291 = vadd.f32 %v207, %v290
  %v292 = vpop.f32.mrf.mxu0
  %293 = vmatprep.mubr.f32.mxu0 0.0
  %294 = vmatmul.mubr.f32.gmra.mxu0 %v174
  %v295 = vpop.f32.mrf.mxu0
  %v296 = vadd.f32 %v207, %v295
  %v297 = vpop.f32.mrf.mxu0
  %298 = vmatprep.mubr.f32.mxu0 0.0
  %299 = vmatmul.mubr.f32.gmra.mxu0 %v175
  %v300 = vpop.f32.mrf.mxu0
  %v301 = vadd.f32 %v207, %v300
  %v302 = vpop.f32.mrf.mxu0
  %303 = vmatprep.mubr.f32.mxu0 0.0
  %304 = vmatmul.mubr.f32.gmra.mxu0 %v176
  %v305 = vpop.f32.mrf.mxu0
  %v306 = vadd.f32 %v207, %v305
  %v307 = vpop.f32.mrf.mxu0
  %308 = vmatprep.mubr.f32.mxu0 0.0
  %309 = vmatmul.mubr.f32.gmra.mxu0 %v177
  %v310 = vpop.f32.mrf.mxu0
  %v311 = vadd.f32 %v207, %v310
  %v312 = vpop.f32.mrf.mxu0
  %313 = vmatprep.mubr.f32.mxu0 0.0
  %314 = vmatmul.mubr.f32.gmra.mxu0 %v178
  %v315 = vpop.f32.mrf.mxu0
  %v316 = vadd.f32 %v207, %v315
  %v317 = vpop.f32.mrf.mxu0
  %318 = vmatprep.mubr.f32.mxu0 0.0
  %319 = vmatmul.mubr.f32.gmra.mxu0 %v179
  %v320 = vpop.f32.mrf.mxu0
  %v321 = vadd.f32 %v207, %v320
  %v322 = vpop.f32.mrf.mxu0
  %323 = vmatprep.mubr.f32.mxu0 0.0
  %324 = vmatmul.mubr.f32.gmra.mxu0 %v180
  %v325 = vpop.f32.mrf.mxu0
  %v326 = vadd.f32 %v207, %v325
  %v327 = vpop.f32.mrf.mxu0
  %328 = vmatprep.mubr.f32.mxu0 0.0
  %329 = vmatmul.mubr.f32.gmra.mxu0 %v181
  %v330 = vpop.f32.mrf.mxu0
  %v331 = vadd.f32 %v207, %v330
  %v332 = vpop.f32.mrf.mxu0
  %333 = vmatprep.mubr.f32.mxu0 0.0
  %334 = vmatmul.mubr.f32.gmra.mxu0 %v182
  %v335 = vpop.f32.mrf.mxu0
  %v336 = vadd.f32 %v207, %v335
  %v337 = vpop.f32.mrf.mxu0
  %338 = vmatprep.mubr.f32.mxu0 0.0
  %339 = vmatmul.mubr.f32.gmra.mxu0 %v183
  %v340 = vpop.f32.mrf.mxu0
  %v341 = vadd.f32 %v207, %v340
  %v342 = vpop.f32.mrf.mxu0
  %343 = vmatprep.mubr.f32.mxu0 0.0
  %344 = vmatmul.mubr.f32.gmra.mxu0 %v184
  %v345 = vpop.f32.mrf.mxu0
  %v346 = vadd.f32 %v207, %v345
  %v347 = vpop.f32.mrf.mxu0
  %348 = vmatprep.mubr.f32.mxu0 0.0
  %349 = vmatmul.mubr.f32.gmra.mxu0 %v185
  %v350 = vpop.f32.mrf.mxu0
  %v351 = vadd.f32 %v207, %v350
  %v352 = vpop.f32.mrf.mxu0
  %353 = vdwg.mxu0
  %v354 = vmax.f32 %v276, 0.0
  %v355 = vmax.f32 %v281, 0.0
  %v356 = vmax.f32 %v286, 0.0
  %v357 = vmax.f32 %v291, 0.0
  %v358 = vmax.f32 %v296, 0.0
  %v359 = vmax.f32 %v301, 0.0
  %v360 = vmax.f32 %v306, 0.0
  %v361 = vmax.f32 %v311, 0.0
  %v362 = vmax.f32 %v316, 0.0
  %v363 = vmax.f32 %v321, 0.0
  %v364 = vmax.f32 %v326, 0.0
  %v365 = vmax.f32 %v331, 0.0
  %v366 = vmax.f32 %v336, 0.0
  %v367 = vmax.f32 %v341, 0.0
  %v368 = vmax.f32 %v346, 0.0
  %v369 = vmax.f32 %v351, 0.0
  %v370 = vld [vmem:[%s5] sm:$0x1]
  %v372 = vlaneseq
  %v373 = vshrl.u32 %v372, 7
  %v374 = vsub.s32 0, %v373
  %v375 = vrot.slane %v370, %v374
  %v377 = vmul.f32 %v354, %v375
  %v378 = vmul.f32 %v355, %v375
  %v379 = vmul.f32 %v356, %v375
  %v380 = vmul.f32 %v357, %v375
  %v381 = vmul.f32 %v358, %v375
  %v382 = vmul.f32 %v359, %v375
  %v383 = vmul.f32 %v360, %v375
  %v384 = vmul.f32 %v361, %v375
  %v385 = vmul.f32 %v362, %v375
  %v386 = vmul.f32 %v363, %v375
  %v387 = vmul.f32 %v364, %v375
  %v388 = vmul.f32 %v365, %v375
  %v389 = vmul.f32 %v366, %v375
  %v390 = vmul.f32 %v367, %v375
  %v391 = vmul.f32 %v368, %v375
  %v392 = vmul.f32 %v369, %v375
  %393 = vadd.xlane.f32.xlu0 %v377
  %v394 = vpop.xlane.xlu0 %393
  %395 = vadd.xlane.f32.xlu0 %v378
  %v396 = vpop.xlane.xlu0 %395
  %397 = vadd.xlane.f32.xlu0 %v379
  %v398 = vpop.xlane.xlu0 %397
  %399 = vadd.xlane.f32.xlu0 %v380
  %v400 = vpop.xlane.xlu0 %399
  %401 = vadd.xlane.f32.xlu0 %v381
  %v402 = vpop.xlane.xlu0 %401
  %403 = vadd.xlane.f32.xlu0 %v382
  %v404 = vpop.xlane.xlu0 %403
  %405 = vadd.xlane.f32.xlu0 %v383
  %v406 = vpop.xlane.xlu0 %405
  %407 = vadd.xlane.f32.xlu0 %v384
  %v408 = vpop.xlane.xlu0 %407
  %409 = vadd.xlane.f32.xlu0 %v385
  %v410 = vpop.xlane.xlu0 %409
  %411 = vadd.xlane.f32.xlu0 %v386
  %v412 = vpop.xlane.xlu0 %411
  %413 = vadd.xlane.f32.xlu0 %v387
  %v414 = vpop.xlane.xlu0 %413
  %415 = vadd.xlane.f32.xlu0 %v388
  %v416 = vpop.xlane.xlu0 %415
  %417 = vadd.xlane.f32.xlu0 %v389
  %v418 = vpop.xlane.xlu0 %417
  %419 = vadd.xlane.f32.xlu0 %v390
  %v420 = vpop.xlane.xlu0 %419
  %421 = vadd.xlane.f32.xlu0 %v391
  %v422 = vpop.xlane.xlu0 %421
  %423 = vadd.xlane.f32.xlu0 %v392
  %v424 = vpop.xlane.xlu0 %423
  %v425 = vld [vmem:[#allocation2] sm:$0x1]
  %v427 = vlaneseq
  %v428 = vshrl.u32 %v427, 7
  %v429 = vsub.s32 0, %v428
  %v430 = vrot.slane %v425, %v429
  %v432 = vadd.f32 %v394, %v430
  %v433 = vadd.f32 %v396, %v430
  %v434 = vadd.f32 %v398, %v430
  %v435 = vadd.f32 %v400, %v430
  %v436 = vadd.f32 %v402, %v430
  %v437 = vadd.f32 %v404, %v430
  %v438 = vadd.f32 %v406, %v430
  %v439 = vadd.f32 %v408, %v430
  %v440 = vadd.f32 %v410, %v430
  %v441 = vadd.f32 %v412, %v430
  %v442 = vadd.f32 %v414, %v430
  %v443 = vadd.f32 %v416, %v430
  %v444 = vadd.f32 %v418, %v430
  %v445 = vadd.f32 %v420, %v430
  %v446 = vadd.f32 %v422, %v430
  %v447 = vadd.f32 %v424, %v430
  %vm448 = vcmask 7168
  %449 = vst.msk [vmem:[%s7] sm:$0xff] %vm448, %v432
  %450 = vst.msk [vmem:[%s7 + $0x8] sm:$0xff] %vm448, %v433
  %451 = vst.msk [vmem:[%s7 + $0x10] sm:$0xff] %vm448, %v434
  %452 = vst.msk [vmem:[%s7 + $0x18] sm:$0xff] %vm448, %v435
  %453 = vst.msk [vmem:[%s7 + $0x20] sm:$0xff] %vm448, %v436
  %454 = vst.msk [vmem:[%s7 + $0x28] sm:$0xff] %vm448, %v437
  %455 = vst.msk [vmem:[%s7 + $0x30] sm:$0xff] %vm448, %v438
  %456 = vst.msk [vmem:[%s7 + $0x38] sm:$0xff] %vm448, %v439
  %457 = vst.msk [vmem:[%s7 + $0x40] sm:$0xff] %vm448, %v440
  %458 = vst.msk [vmem:[%s7 + $0x48] sm:$0xff] %vm448, %v441
  %459 = vst.msk [vmem:[%s7 + $0x50] sm:$0xff] %vm448, %v442
  %460 = vst.msk [vmem:[%s7 + $0x58] sm:$0xff] %vm448, %v443
  %461 = vst.msk [vmem:[%s7 + $0x60] sm:$0xff] %vm448, %v444
  %462 = vst.msk [vmem:[%s7 + $0x68] sm:$0xff] %vm448, %v445
  %463 = vst.msk [vmem:[%s7 + $0x70] sm:$0xff] %vm448, %v446
  %464 = vst.msk [vmem:[%s7 + $0x78] sm:$0xff] %vm448, %v447
  // Predicated region
  $region30: #{mlp_forward.1} parent=0 // pred_check
    _
  $region31: #{mlp_forward.1} parent=0 // pred_check_branch
    %466 = sbr.rel (0) target = $region33
  $region32: #{mlp_forward.1} parent=0 // pred_region
    _
  $region33: #{mlp_forward.1} parent=0 // pred_fallthru
    _
  // Predicated region
  $region34: #{mlp_forward.1} parent=0 // pred_check
    _
  $region35: #{mlp_forward.1} parent=0 // pred_check_branch
    %468 = sbr.rel (0) target = $region37
  $region36: #{mlp_forward.1} parent=0 // pred_region
    _
  $region37: #{mlp_forward.1} parent=0 // pred_fallthru
    _

</llo_original>
